<compile_context>
chip_gen: v7x
topology: tpu7x:2x2x1
jax: 0.10.0
libtpu: 0.0.40
codegen_flags: <defaults>
</compile_context>

<pallas_src>
import jax
import jax.numpy as jnp
from jax.experimental import pallas as pl
from jax.experimental.pallas import tpu as pltpu


def _round_up(x, m):
    return (x + m - 1) // m * m


def _log_stft_mag_loss_kernel(lens_ref, x_ref, y_ref, out_ref):
    b = pl.program_id(0)          # batch index
    j = pl.program_id(1)          # frame-tile index
    _, tile_t, d_pad = x_ref.shape

    x = x_ref[0].astype(jnp.float32)          # (tile_t, d_pad)
    y = y_ref[0].astype(jnp.float32)
    # Single log per element instead of two: |log(y) - log(x)| == |log(y / x)|.
    diff = jnp.abs(jnp.log(y / x))

    # Frame-validity mask: (tile_t, 1) compare, broadcast across the lane axis.
    fidx = j * tile_t + jax.lax.broadcasted_iota(jnp.int32, (tile_t, 1), 0)
    masked = jnp.where(fidx < lens_ref[b], diff, 0.0)

    # Partial reduce along the frame (sublane) axis only; the result stays
    # lane-dense (1, d_pad).  Final scalar reduction happens in the wrapper.
    partial = jnp.sum(masked, axis=0, keepdims=True)      # (1, d_pad)
    out_ref[...] = partial.reshape(1, 1, 1, d_pad)


def log_stft_magnitude_loss(x_mag, y_mag, len_ratios=None, *, max_tile_t=512):
    """JAX/Pallas equivalent of LogSTFTMagnitudeLoss.forward."""
    assert x_mag.shape == y_mag.shape and x_mag.ndim == 3
    b, t, d = y_mag.shape

    if len_ratios is None:
        # F.l1_loss(log y, log x) == masked loss with all frames valid.
        lens = jnp.full((b,), t, dtype=jnp.int32)
    else:
        lens = jnp.ceil(len_ratios.astype(jnp.float32) * t).astype(jnp.int32)

    # Lane-dense padding of the freq axis; padded bins hold 1.0 in both inputs
    # so |log(y/x)| == 0 there and they never perturb the sum.
    d_pad = _round_up(d, 128)

    # Frame-tile size: multiple of 8, capped so that
    # 2 inputs x 2 pipeline buffers x tile fits comfortably under the tightest
    # scoped-VMEM default (v5e: 16 MiB).
    itemsize = jnp.dtype(x_mag.dtype).itemsize
    budget = 12 * 1024 * 1024
    fit_t = max(8, (budget // (4 * d_pad * itemsize)) // 8 * 8)
    tile_t = max(8, min(_round_up(t, 8), max_tile_t, fit_t))
    t_pad = _round_up(t, tile_t)
    nt = t_pad // tile_t

    def _pad(a):
        return jnp.pad(a, ((0, 0), (0, t_pad - t), (0, d_pad - d)),
                       constant_values=1.0)

    xp, yp = _pad(x_mag), _pad(y_mag)

    partials = pl.pallas_call(
        _log_stft_mag_loss_kernel,
        out_shape=jax.ShapeDtypeStruct((b, nt, 1, d_pad), jnp.float32),
        grid_spec=pltpu.PrefetchScalarGridSpec(
            num_scalar_prefetch=1,
            grid=(b, nt),
            in_specs=[
                pl.BlockSpec((1, tile_t, d_pad), lambda i, j, lens: (i, j, 0)),
                pl.BlockSpec((1, tile_t, d_pad), lambda i, j, lens: (i, j, 0)),
            ],
            out_specs=pl.BlockSpec((1, 1, 1, d_pad),
                                   lambda i, j, lens: (i, j, 0, 0)),
        ),
        compiler_params=pltpu.CompilerParams(
            dimension_semantics=("parallel", "parallel"),
            vmem_limit_bytes=32 * 1024 * 1024),
    )(lens, xp, yp)

    masked_sum = jnp.sum(partials)
    # mask.sum() == sum_b min(lens[b], t); computed analytically (no kernel work).
    count = jnp.sum(jnp.minimum(lens, t).astype(jnp.float32))
    return masked_sum / (count * d)


def _reference(x_mag, y_mag, len_ratios):
    """Pure-JAX reference mirroring the PyTorch module."""
    b, t, d = y_mag.shape
    if len_ratios is None:
        return jnp.mean(jnp.abs(jnp.log(y_mag) - jnp.log(x_mag)))
    lens = jnp.ceil(len_ratios * t).astype(jnp.int32)
    mask = (jnp.arange(t)[None, :] < lens[:, None]).astype(jnp.float32)[..., None]
    loss = jnp.abs(jnp.log(y_mag) - jnp.log(x_mag))
    return jnp.sum(loss * mask) / (jnp.sum(mask) * d)


if __name__ == "__main__":
    key = jax.random.PRNGKey(0)
    k1, k2 = jax.random.split(key)

    # Small STFT-like shapes: B=2, 20 frames, 129 freq bins (exercises both
    # frame padding to a multiple of 8 and freq padding to a multiple of 128).
    B, T, D = 2, 20, 129
    # Magnitude spectrograms are strictly positive (avoid log(0)).
    x_mag = jax.random.uniform(k1, (B, T, D), jnp.float32, minval=0.1, maxval=2.0)
    y_mag = jax.random.uniform(k2, (B, T, D), jnp.float32, minval=0.1, maxval=2.0)
    len_ratios = jnp.array([1.0, 0.5], dtype=jnp.float32)

    # Masked branch
    loss_masked = log_stft_magnitude_loss(x_mag, y_mag, len_ratios)
    jax.block_until_ready(loss_masked)
    ref_masked = _reference(x_mag, y_mag, len_ratios)

    # len_ratios is None branch
    loss_none = log_stft_magnitude_loss(x_mag, y_mag, None)
    jax.block_until_ready(loss_none)
    ref_none = _reference(x_mag, y_mag, None)

    assert jnp.allclose(loss_masked, ref_masked, rtol=1e-5, atol=1e-5), (
        loss_masked, ref_masked)
    assert jnp.allclose(loss_none, ref_none, rtol=1e-5, atol=1e-5), (
        loss_none, ref_none)

    print("KERNEL_OK")
</pallas_src>

<mosaic_0001>
module attributes {stable_mosaic.version = 11 : i64} {
  func.func @_log_stft_mag_loss_kernel(%arg0: i32, %arg1: i32, %arg2: memref<2xi32, #tpu.memory_space<smem>>, %arg3: memref<1x24x256xf32, #tpu.memory_space<vmem>>, %arg4: memref<1x24x256xf32, #tpu.memory_space<vmem>>, %arg5: memref<1x1x1x256xf32, #tpu.memory_space<vmem>>) attributes {dimension_semantics = [#tpu.dimension_semantics<parallel>, #tpu.dimension_semantics<parallel>], iteration_bounds = array<i64: 2, 1>, scalar_prefetch = 1 : i64, scratch_operands = 0 : i64, tpu.core_type = #tpu.core_type<tc>, window_params = [{transform_indices = @transform_0, window_bounds = array<i64: 1, 24, 256>}, {transform_indices = @transform_1, window_bounds = array<i64: 1, 24, 256>}, {transform_indices = @transform_2, window_bounds = array<i64: 1, 1, 1, 256>}]} {
    %c0 = arith.constant 0 : index
    %c0_0 = arith.constant 0 : index
    %c0_1 = arith.constant 0 : index
    %0 = vector.load %arg3[%c0, %c0_0, %c0_1] : memref<1x24x256xf32, #tpu.memory_space<vmem>>, vector<1x24x256xf32>
    %1 = vector.shape_cast %0 : vector<1x24x256xf32> to vector<24x256xf32>
    %c0_2 = arith.constant 0 : index
    %c0_3 = arith.constant 0 : index
    %c0_4 = arith.constant 0 : index
    %2 = vector.load %arg4[%c0_2, %c0_3, %c0_4] : memref<1x24x256xf32, #tpu.memory_space<vmem>>, vector<1x24x256xf32>
    %3 = vector.shape_cast %2 : vector<1x24x256xf32> to vector<24x256xf32>
    %4 = arith.divf %3, %1 : vector<24x256xf32>
    %5 = math.log %4 : vector<24x256xf32>
    %6 = math.absf %5 : vector<24x256xf32>
    %c24_i32 = arith.constant 24 : i32
    %7 = arith.muli %arg1, %c24_i32 : i32
    %8 = tpu.iota {dimensions = array<i32: 0>} : vector<24x1xi32>
    %9 = vector.broadcast %7 : i32 to vector<24x1xi32>
    %10 = arith.addi %9, %8 : vector<24x1xi32>
    %11 = arith.index_cast %arg0 : i32 to index
    %12 = memref.load %arg2[%11] : memref<2xi32, #tpu.memory_space<smem>>
    %13 = vector.broadcast %12 : i32 to vector<24x1xi32>
    %14 = arith.cmpi slt, %10, %13 : vector<24x1xi32>
    %cst = arith.constant 0.000000e+00 : f32
    %15 = vector.shape_cast %14 : vector<24x1xi1> to vector<24x1xi1>
    %16 = vector.broadcast %15 : vector<24x1xi1> to vector<24x256xi1>
    %17 = vector.broadcast %cst : f32 to vector<24x256xf32>
    %18 = arith.select %16, %6, %17 : vector<24x256xi1>, vector<24x256xf32>
    %cst_5 = arith.constant dense<0.000000e+00> : vector<256xf32>
    %19 = vector.multi_reduction <add>, %18, %cst_5 [0] : vector<24x256xf32> to vector<256xf32>
    %20 = vector.shape_cast %19 : vector<256xf32> to vector<1x256xf32>
    %21 = vector.shape_cast %20 : vector<1x256xf32> to vector<1x1x1x256xf32>
    %c0_6 = arith.constant 0 : index
    %c0_7 = arith.constant 0 : index
    %c0_8 = arith.constant 0 : index
    %c0_9 = arith.constant 0 : index
    %22 = vector.load %arg5[%c0_6, %c0_7, %c0_8, %c0_9] : memref<1x1x1x256xf32, #tpu.memory_space<vmem>>, vector<1x1x1x256xf32>
    tpu.vector_store %arg5[%c0_6, %c0_7, %c0_8, %c0_9], %21 {strides = array<i32>} : memref<1x1x1x256xf32, #tpu.memory_space<vmem>>, vector<1x1x1x256xf32>,
    return
  }
  func.func @transform_0(%arg0: i32, %arg1: i32, %arg2: memref<2xi32, #tpu.memory_space<smem>>) -> (i32, i32, i32) {
    %c0_i32 = arith.constant 0 : i32
    %c0_i32_0 = arith.constant 0 : i32
    return %arg0, %arg1, %c0_i32 : i32, i32, i32
  }
  func.func @transform_1(%arg0: i32, %arg1: i32, %arg2: memref<2xi32, #tpu.memory_space<smem>>) -> (i32, i32, i32) {
    %c0_i32 = arith.constant 0 : i32
    %c0_i32_0 = arith.constant 0 : i32
    return %arg0, %arg1, %c0_i32 : i32, i32, i32
  }
  func.func @transform_2(%arg0: i32, %arg1: i32, %arg2: memref<2xi32, #tpu.memory_space<smem>>) -> (i32, i32, i32, i32) {
    %c0_i32 = arith.constant 0 : i32
    %c0_i32_0 = arith.constant 0 : i32
    %c0_i32_1 = arith.constant 0 : i32
    return %arg0, %arg1, %c0_i32, %c0_i32_0 : i32, i32, i32, i32
  }
}

</mosaic_0001>

<llo_original>
// kernel: tpu_custom_call.1
$region0: #{tpu_custom_call.1}
  #allocation0 [shape = 'u32[]', space=smem, size = 0x4, offset = 0x4, fixed_abs, tag = 'smem constant byte address 0x4 - core index']
  #allocation1 [shape = 'u32[144,128]{1,0:T(1,128)}', space=vmem, size = 0x12000, scoped, tag = 'internal scratch']
  #allocation2 [shape = 's32[1]{0}', space=sflag, size = 0x4, scoped, tag = 'scoped memory for tpu_custom_call.1']
  #allocation3 [shape = 'u8[512]{0}', space=smem, size = 0x200, scoped, tag = 'prefetched SMEM operand 0']
  %s0 = inlined_call_operand.hbm [shape: s32[2], index: 0, kind: input, shape index: {}]
  %s1 = inlined_call_operand.hbm [shape: f32[2,24,256], index: 1, kind: input, shape index: {}]
  %s2 = inlined_call_operand.hbm [shape: f32[2,24,256], index: 2, kind: input, shape index: {}]
  %s3 = inlined_call_operand.hbm [shape: f32[2,1,1,256], index: 3, kind: output, shape index: {}]
  %s4 = sld [smem:[#allocation0]]
  $region49: #{tpu_custom_call.1} parent=0
    _
  %s6 = ssub.s32 1, %s4
  %s7 = scalar_select 0, %s6, %s4
  %9 = dma.hbm_to_smem %s0, 16, [#allocation3], [#allocation2]
  %10 = dma.done [#allocation2], 16
  %11 = sfence
  $region1: #{tpu_custom_call.1} parent=0
    #allocation4 [shape = 'u8[49152]{0}', space=vmem, size = 0xc000, scoped, tag = 'input window, operand 1']
    #allocation5 [shape = 's32[2]{0}', space=sflag, size = 0x8, scoped, tag = 'scoped memory for tpu_custom_call.1']
    #allocation6 [shape = 's32[2]{0}', space=sflag, size = 0x8, scoped, tag = 'scoped memory for tpu_custom_call.1']
    #allocation7 [shape = 'u8[49152]{0}', space=vmem, size = 0xc000, scoped, tag = 'input window, operand 2']
    #allocation8 [shape = 's32[2]{0}', space=sflag, size = 0x8, scoped, tag = 'scoped memory for tpu_custom_call.1']
    #allocation9 [shape = 'u8[2048]{0}', space=vmem, size = 0x800, scoped, tag = 'output window, operand 0']
    %12 = vsyncpa [#allocation5], 0
    %s13 = scalar_lea.sflag [#allocation5], 1
    %14 = vsyncpa %s13, 0
    %15 = vsyncpa [#allocation8], 0
    %s16 = scalar_lea.sflag [#allocation8], 1
    %17 = vsyncpa %s16, 0
    %18 = vsyncpa [#allocation6], 0
    %s19 = scalar_lea.sflag [#allocation6], 1
    %20 = vsyncpa %s19, 0
    loop: start=0, step=1, limit=4
    $region2: #{tpu_custom_call.1} parent=1 // loop_pre_header
      _
    $region3: #{tpu_custom_call.1} parent=1 // loop_header
      %s22 = sphi 0, %s26
      %p23 = scmp.ge.s32.totalorder %s22, 4
      %s29 = sphi 0, %s41
      %s30 = sphi 0, %s37
      %s31 = sphi 0, %s29
      %s32 = sphi 0, %s30
      %s33 = sphi 0, %s31
      %s34 = sphi 0, %s32
      %s46 = sphi 0, %s48
      %s49 = sphi 0, %s46
      %s50 = sphi 0, %s49
      %s66 = sphi 0, %s50
      %s74 = sphi 0, %s76
      %s77 = sphi 0, %s74
      %s78 = sphi 0, %s77
      %s94 = sphi 0, %s78
      %s102 = sphi 0, %s104
      %s105 = sphi 0, %s102
      %s106 = sphi 0, %s105
      %s122 = sphi 0, %s106
    $region4: #{tpu_custom_call.1} parent=1 // loop_header_branch
      %25 = sbr.rel (%p23) target = $region8
    $region5: #{tpu_custom_call.1} parent=1 // loop_body
      %s27 = ssub.s32 %s22, 1
      %s28 = ssub.s32 %s22, 2
      %s35 = sadd.s32 1, %s30
      %p36 = scmp.ge.s32.totalorder %s35, 1
      %s37 = scalar_select %p36, 0, %s35
      %s38 = sadd.s32 1, %s29
      %s39 = scalar_select %p36, %s38, %s29
      %p40 = scmp.ge.s32.totalorder %s39, 2
      %s41 = scalar_select %p40, 0, %s39
      %s42 = ssub.s32 %s29, %s41
      %s43 = ssub.s32 %s30, %s37
      %s44 = sor.u32 %s42, %s43
      %p45 = scmp.eq.s32.totalorder %s44, 0
      %s47 = sadd.s32 %s46, 1
      %s48 = scalar_select %p45, %s46, %s47
      %p51 = pneg %p45
      %p52 = scmp.eq.s32.totalorder %s22, 1
      %p53 = por %p51, %p52
      %p54 = scmp.ne.s32.totalorder %s46, %s49
      %p55 = scmp.eq.s32.totalorder %s22, 0
      %p56 = por %p54, %p55
      %p57 = scmp.ne.s32.totalorder %s46, %s49
      %p58 = scmp.eq.s32.totalorder %s27, 1
      %p59 = por %p57, %p58
      %p60 = scmp.ne.s32.totalorder %s49, %s50
      %p61 = scmp.eq.s32.totalorder %s27, 0
      %p62 = por %p60, %p61
      %p63 = scmp.ne.s32.totalorder %s49, %s50
      %p64 = scmp.eq.s32.totalorder %s28, 1
      %p65 = por %p63, %p64
      %p67 = scmp.ne.s32.totalorder %s50, %s66
      %p68 = scmp.eq.s32.totalorder %s28, 0
      %p69 = por %p67, %p68
      %s70 = ssub.s32 %s29, %s41
      %s71 = ssub.s32 %s30, %s37
      %s72 = sor.u32 %s70, %s71
      %p73 = scmp.eq.s32.totalorder %s72, 0
      %s75 = sadd.s32 %s74, 1
      %s76 = scalar_select %p73, %s74, %s75
      %p79 = pneg %p73
      %p80 = scmp.eq.s32.totalorder %s22, 1
      %p81 = por %p79, %p80
      %p82 = scmp.ne.s32.totalorder %s74, %s77
      %p83 = scmp.eq.s32.totalorder %s22, 0
      %p84 = por %p82, %p83
      %p85 = scmp.ne.s32.totalorder %s74, %s77
      %p86 = scmp.eq.s32.totalorder %s27, 1
      %p87 = por %p85, %p86
      %p88 = scmp.ne.s32.totalorder %s77, %s78
      %p89 = scmp.eq.s32.totalorder %s27, 0
      %p90 = por %p88, %p89
      %p91 = scmp.ne.s32.totalorder %s77, %s78
      %p92 = scmp.eq.s32.totalorder %s28, 1
      %p93 = por %p91, %p92
      %p95 = scmp.ne.s32.totalorder %s78, %s94
      %p96 = scmp.eq.s32.totalorder %s28, 0
      %p97 = por %p95, %p96
      %s98 = ssub.s32 %s29, %s41
      %s99 = ssub.s32 %s30, %s37
      %s100 = sor.u32 %s98, %s99
      %p101 = scmp.eq.s32.totalorder %s100, 0
      %s103 = sadd.s32 %s102, 1
      %s104 = scalar_select %p101, %s102, %s103
      %p107 = pneg %p101
      %p108 = scmp.eq.s32.totalorder %s22, 1
      %p109 = por %p107, %p108
      %p110 = scmp.ne.s32.totalorder %s102, %s105
      %p111 = scmp.eq.s32.totalorder %s22, 0
      %p112 = por %p110, %p111
      %p113 = scmp.ne.s32.totalorder %s102, %s105
      %p114 = scmp.eq.s32.totalorder %s27, 1
      %p115 = por %p113, %p114
      %p116 = scmp.ne.s32.totalorder %s105, %s106
      %p117 = scmp.eq.s32.totalorder %s27, 0
      %p118 = por %p116, %p117
      %p119 = scmp.ne.s32.totalorder %s105, %s106
      %p120 = scmp.eq.s32.totalorder %s28, 1
      %p121 = por %p119, %p120
      %p123 = scmp.ne.s32.totalorder %s106, %s122
      %p124 = scmp.eq.s32.totalorder %s28, 0
      %p125 = por %p123, %p124
      %p126 = scmp.le.s32.totalorder 1, %s22
      %p127 = scmp.lt.s32.totalorder %s22, 3
      %p128 = pnand %p126, %p127
      %p129 = pneg %p128
      // Predicated region
      $region9: #{tpu_custom_call.1} parent=5 // pred_check
        _
      $region10: #{tpu_custom_call.1} parent=5 // pred_check_branch
        %131 = sbr.rel (%p128) target = $region12
      $region11: #{tpu_custom_call.1} parent=5 // pred_region
        %s132 = ssub.s32 %s22, 1
      $region12: #{tpu_custom_call.1} parent=5 // pred_fallthru
        _
      %p133 = scmp.lt.s32.totalorder %s22, 2
      // Predicated region
      $region13: #{tpu_custom_call.1} parent=5 // pred_check
        %p134 = pneg %p133
      $region14: #{tpu_custom_call.1} parent=5 // pred_check_branch
        %136 = sbr.rel (%p134) target = $region16
      $region15: #{tpu_custom_call.1} parent=5 // pred_region
        // Predicated region
        $region17: #{tpu_custom_call.1} parent=15 // pred_check
          %p137 = pneg %p56
        $region18: #{tpu_custom_call.1} parent=15 // pred_check_branch
          %139 = sbr.rel (%p137) target = $region20
        $region19: #{tpu_custom_call.1} parent=15 // pred_region
          %s140 = sand.u32 %s46, 1
          %s141 = scalar_lea.sflag [#allocation5], %s140
          %s142 = sand.u32 %s46, 1
          %s143 = smul.addr %s142, 48
          %s144 = scalar_lea.vmem [#allocation4], %s143
          %s145 = smul.u32 3, %s30
          %s147 = ssub.s32 768, 768
          %148 = vsyncadd %s141, %s147
          %s149 = smul.addr %s145, 2
          %s150 = smul.addr %s29, 6
          %s151 = sadd.s32 %s149, %s150
          %s152 = smul.addr %s151, 128
          %s153 = scalar_lea.hbm %s1, %s152
          %s154 = sshll.u32 %s144, 4
          %s155 = int_to_ptr.vmem [resolvable:$true] %s154
          %160 = dma.hbm_to_vmem [thread:$0]  %s153, 768, %s155, %s141, 256, 256, 16
        $region20: #{tpu_custom_call.1} parent=15 // pred_fallthru
          _
        // Predicated region
        $region21: #{tpu_custom_call.1} parent=15 // pred_check
          %p161 = pneg %p84
        $region22: #{tpu_custom_call.1} parent=15 // pred_check_branch
          %163 = sbr.rel (%p161) target = $region24
        $region23: #{tpu_custom_call.1} parent=15 // pred_region
          %s164 = sand.u32 %s74, 1
          %s165 = scalar_lea.sflag [#allocation8], %s164
          %s166 = sand.u32 %s74, 1
          %s167 = smul.addr %s166, 48
          %s168 = scalar_lea.vmem [#allocation7], %s167
          %s169 = smul.u32 3, %s30
          %s171 = ssub.s32 768, 768
          %172 = vsyncadd %s165, %s171
          %s173 = smul.addr %s169, 2
          %s174 = smul.addr %s29, 6
          %s175 = sadd.s32 %s173, %s174
          %s176 = smul.addr %s175, 128
          %s177 = scalar_lea.hbm %s2, %s176
          %s178 = sshll.u32 %s168, 4
          %s179 = int_to_ptr.vmem [resolvable:$true] %s178
          %184 = dma.hbm_to_vmem [thread:$0]  %s177, 768, %s179, %s165, 256, 256, 16
        $region24: #{tpu_custom_call.1} parent=15 // pred_fallthru
          _
      $region16: #{tpu_custom_call.1} parent=5 // pred_fallthru
        _
      %p185 = scmp.le.s32.totalorder 1, %s22
      %p186 = scmp.lt.s32.totalorder %s22, 3
      %p187 = pnand %p185, %p186
      %p188 = pneg %p187
      // Predicated region
      $region25: #{tpu_custom_call.1} parent=5 // pred_check
        _
      $region26: #{tpu_custom_call.1} parent=5 // pred_check_branch
        %190 = sbr.rel (%p187) target = $region28
      $region27: #{tpu_custom_call.1} parent=5 // pred_region
        %s191 = ssub.s32 %s22, 1
        %s192 = sand.u32 %s49, 1
        %s193 = scalar_lea.sflag [#allocation5], %s192
        %s194 = sand.u32 %s49, 1
        %s195 = smul.addr %s194, 48
        %s196 = scalar_lea.vmem [#allocation4], %s195
        // Predicated region
        $region29: #{tpu_custom_call.1} parent=27 // pred_check
          %p197 = pneg %p62
        $region30: #{tpu_custom_call.1} parent=27 // pred_check_branch
          %199 = sbr.rel (%p197) target = $region32
        $region31: #{tpu_custom_call.1} parent=27 // pred_region
          %200 = dma.done %s193, 768
        $region32: #{tpu_custom_call.1} parent=27 // pred_fallthru
          _
        %s201 = sand.u32 %s77, 1
        %s202 = scalar_lea.sflag [#allocation8], %s201
        %s203 = sand.u32 %s77, 1
        %s204 = smul.addr %s203, 48
        %s205 = scalar_lea.vmem [#allocation7], %s204
        // Predicated region
        $region33: #{tpu_custom_call.1} parent=27 // pred_check
          %p206 = pneg %p90
        $region34: #{tpu_custom_call.1} parent=27 // pred_check_branch
          %208 = sbr.rel (%p206) target = $region36
        $region35: #{tpu_custom_call.1} parent=27 // pred_region
          %209 = dma.done %s202, 768
        $region36: #{tpu_custom_call.1} parent=27 // pred_fallthru
          _
        %s210 = sand.u32 %s49, 1
        %s211 = scalar_lea.sflag [#allocation5], %s210
        %s212 = sand.u32 %s49, 1
        %s213 = smul.addr %s212, 48
        %s214 = scalar_lea.vmem [#allocation4], %s213
        %p215 = pneg %p62
        %p216 = pneg %p59
        %s217 = sand.u32 %s77, 1
        %s218 = scalar_lea.sflag [#allocation8], %s217
        %s219 = sand.u32 %s77, 1
        %s220 = smul.addr %s219, 48
        %s221 = scalar_lea.vmem [#allocation7], %s220
        %p222 = pneg %p90
        %p223 = pneg %p87
        %p224 = pneg %p118
        %p225 = pneg %p115
        %s226 = sand.u32 %s105, 1
        %s227 = scalar_lea.sflag [#allocation6], %s226
        %s228 = sand.u32 %s105, 1
        %s229 = smul.addr %s228, 2
        %s230 = scalar_lea.vmem [#allocation9], %s229
        %s231 = smul.u32 3, %s32
        %s232 = smul.u32 3, %s32
        %v233 = vld [vmem:[%s196] sm:$0xff]
        %v234 = vld [vmem:[%s196 + $0x8] sm:$0xff]
        %v235 = vld [vmem:[%s196 + $0x10] sm:$0xff]
        %v236 = vld [vmem:[%s196 + $0x18] sm:$0xff]
        %v237 = vld [vmem:[%s196 + $0x20] sm:$0xff]
        %v238 = vld [vmem:[%s196 + $0x28] sm:$0xff]
        %v239 = vld [vmem:[%s205] sm:$0xff]
        %v240 = vld [vmem:[%s205 + $0x8] sm:$0xff]
        %v241 = vld [vmem:[%s205 + $0x10] sm:$0xff]
        %v242 = vld [vmem:[%s205 + $0x18] sm:$0xff]
        %v243 = vld [vmem:[%s205 + $0x20] sm:$0xff]
        %v244 = vld [vmem:[%s205 + $0x28] sm:$0xff]
        %v245 = vrcp.pop %v233
        %v246 = vmul.f32 %v239, %v245
        %v247 = vrcp.pop %v234
        %v248 = vmul.f32 %v240, %v247
        %v249 = vrcp.pop %v235
        %v250 = vmul.f32 %v241, %v249
        %v251 = vrcp.pop %v236
        %v252 = vmul.f32 %v242, %v251
        %v253 = vrcp.pop %v237
        %v254 = vmul.f32 %v243, %v253
        %v255 = vrcp.pop %v238
        %v256 = vmul.f32 %v244, %v255
        %v257 = vlog2.pop %v246
        %v258 = vmul.f32 %v257, 0.6931472
        %v259 = vlog2.pop %v248
        %v260 = vmul.f32 %v259, 0.6931472
        %v261 = vlog2.pop %v250
        %v262 = vmul.f32 %v261, 0.6931472
        %v263 = vlog2.pop %v252
        %v264 = vmul.f32 %v263, 0.6931472
        %v265 = vlog2.pop %v254
        %v266 = vmul.f32 %v265, 0.6931472
        %v267 = vlog2.pop %v256
        %v268 = vmul.f32 %v267, 0.6931472
        %v269 = vand.u32 2147483647, %v258
        %v270 = vand.u32 2147483647, %v260
        %v271 = vand.u32 2147483647, %v262
        %v272 = vand.u32 2147483647, %v264
        %v273 = vand.u32 2147483647, %v266
        %v274 = vand.u32 2147483647, %v268
        %s275 = smul.u32 %s32, 24
        %v276 = vlaneseq
        %v277 = vshrl.u32 %v276, 7
        %v278 = vadd.s32 %v277, 8
        %v279 = vadd.s32 %v277, 16
        %v280 = vstv %s275
        %v281 = vadd.s32 %v280, %v277
        %v282 = vadd.s32 %v280, %v278
        %v283 = vadd.s32 %v280, %v279
        %s284 = sld [smem:[#allocation3 + %s31]]
        %v285 = vstv %s284
        %vm286 = vcmp.lt.s32.totalorder %v281, %v285
        %vm287 = vcmp.lt.s32.totalorder %v282, %v285
        %vm288 = vcmp.lt.s32.totalorder %v283, %v285
        %v289 = vsel %vm286, 1, 0
        %v290 = vsel %vm287, 1, 0
        %v291 = vsel %vm288, 1, 0
        %vm292 = vcmp.eq.s32.totalorder %v289, 1
        %vm293 = vcmp.eq.s32.totalorder %v290, 1
        %vm294 = vcmp.eq.s32.totalorder %v291, 1
        %v295 = vsel %vm292, %v269, 0.0
        %v296 = vsel %vm292, %v270, 0.0
        %v297 = vsel %vm293, %v271, 0.0
        %v298 = vsel %vm293, %v272, 0.0
        %v299 = vsel %vm294, %v273, 0.0
        %v300 = vsel %vm294, %v274, 0.0
        %v301 = vadd.f32 %v295, %v297
        %v302 = vadd.f32 %v301, %v299
        %v303 = vrot.slane %v302, 4
        %v304 = vadd.f32 %v302, %v303
        %v305 = vrot.slane %v304, 2
        %v306 = vadd.f32 %v304, %v305
        %v307 = vrot.slane %v306, 1
        %v308 = vadd.f32 %v306, %v307
        %v309 = vadd.f32 %v296, %v298
        %v310 = vadd.f32 %v309, %v300
        %v311 = vrot.slane %v310, 4
        %v312 = vadd.f32 %v310, %v311
        %v313 = vrot.slane %v312, 2
        %v314 = vadd.f32 %v312, %v313
        %v315 = vrot.slane %v314, 1
        %v316 = vadd.f32 %v314, %v315
        %v319 = vcombine.low %v308, %v316
        %v321 = vunpack.c.l.s4 1966171168
        %v322 = vunpack.c.0.s8 %v321
        %v323 = vlaneseq
        %v324 = vshrl.u32 %v323, 7
        %v325 = vsub.s32 %v322, %v324
        %v326 = vrot.slane %v319, %v325
        %v328 = vunpack.c.l.s4 1966171168
        %v329 = vunpack.c.0.s8 %v328
        %v330 = vlaneseq
        %v331 = vshrl.u32 %v330, 7
        %v332 = vsub.s32 %v329, %v331
        %v333 = vrot.slane %v326, %v332
        %v335 = vlaneseq
        %vm336 = vcmp.ge.s32.totalorder %v335, 0
        %vm337 = vcmp.lt.s32.totalorder %v335, 256
        %vm338 = vmand %vm336, %vm337
        %339 = vst.msk [vmem:[%s230] sm:$0x3] %vm338, %v333
        %s340 = sand.u32 %s105, 1
        %s341 = scalar_lea.sflag [#allocation6], %s340
        %s342 = sand.u32 %s105, 1
        %s343 = smul.addr %s342, 2
        %s344 = scalar_lea.vmem [#allocation9], %s343
        // Predicated region
        $region37: #{tpu_custom_call.1} parent=27 // pred_check
          %p345 = pneg %p115
        $region38: #{tpu_custom_call.1} parent=27 // pred_check_branch
          %347 = sbr.rel (%p345) target = $region40
        $region39: #{tpu_custom_call.1} parent=27 // pred_region
          %s349 = ssub.s32 32, 32
          %350 = vsyncadd %s341, %s349
          %s351 = smul.addr %s32, 2
          %s352 = smul.addr %s31, 2
          %s353 = sadd.s32 %s351, %s352
          %s354 = smul.addr %s353, 16
          %s355 = scalar_lea.hbm %s3, %s354
          %s357 = sshll.u32 %s344, 4
          %s358 = int_to_ptr.vmem [resolvable:$true] %s357
          %360 = dma.vmem_to_hbm [thread:$0]  %s358, 32, %s355, %s341
        $region40: #{tpu_custom_call.1} parent=27 // pred_fallthru
          _
      $region28: #{tpu_custom_call.1} parent=5 // pred_fallthru
        _
      %p361 = scmp.le.s32.totalorder 2, %s22
      // Predicated region
      $region41: #{tpu_custom_call.1} parent=5 // pred_check
        %p362 = pneg %p361
      $region42: #{tpu_custom_call.1} parent=5 // pred_check_branch
        %364 = sbr.rel (%p362) target = $region44
      $region43: #{tpu_custom_call.1} parent=5 // pred_region
        %s365 = ssub.s32 %s22, 2
        // Predicated region
        $region45: #{tpu_custom_call.1} parent=43 // pred_check
          %p366 = pneg %p121
        $region46: #{tpu_custom_call.1} parent=43 // pred_check_branch
          %368 = sbr.rel (%p366) target = $region48
        $region47: #{tpu_custom_call.1} parent=43 // pred_region
          %s369 = sand.u32 %s106, 1
          %s370 = scalar_lea.sflag [#allocation6], %s369
          %s371 = sand.u32 %s106, 1
          %s372 = smul.addr %s371, 2
          %s373 = scalar_lea.vmem [#allocation9], %s372
          %374 = dma.done %s370, 32
        $region48: #{tpu_custom_call.1} parent=43 // pred_fallthru
          _
      $region44: #{tpu_custom_call.1} parent=5 // pred_fallthru
        _
    $region6: #{tpu_custom_call.1} parent=1 // loop_footer
      %s26 = sadd.s32 1, %s22
    $region7: #{tpu_custom_call.1} parent=1 // loop_footer_branch
      %21 = sbr.rel target = $region3
    $region8: #{tpu_custom_call.1} parent=1 // loop_exit
      _
    %375 = vsyncpa [#allocation5], 1
    %s376 = scalar_lea.sflag [#allocation5], 1
    %377 = vsyncpa %s376, 1
    %378 = vsyncpa [#allocation8], 1
    %s379 = scalar_lea.sflag [#allocation8], 1
    %380 = vsyncpa %s379, 1
    %381 = vsyncpa [#allocation6], 1
    %s382 = scalar_lea.sflag [#allocation6], 1
    %383 = vsyncpa %s382, 1

</llo_original>
